<compile_context>
chip_gen: v6e
topology: v6e:2x2x1
jax: 0.10.0
libtpu: 0.0.40
codegen_flags: <defaults>
</compile_context>

<pallas_src>
import functools

import numpy as np

import jax
import jax.numpy as jnp
from jax import lax
from jax.experimental import pallas as pl
from jax.experimental.pallas import tpu as pltpu


def _pos_enc_kernel(e_ref, sel_ref, freq_ref, phase_ref, out_ref, *, tile_n):
    """One (batch, node-tile) grid step.

    e_ref     : (TN, C) int32   neighbor indices; C = K, or 2K (hi/lo byte cols)
    sel_ref   : (C, L)  float32 0/1 "repeat column c across its embedding lanes"
    freq_ref  : (1, L)  float32 tile([freq, freq], K)
    phase_ref : (1, L)  float32 pi/2 on cos lanes, 0 on sin lanes
    out_ref   : (TN, L)         lane-dense output slab (L = K * num_embeddings)
    """
    # Exact: every column value has <= 8 significant bits (or N <= 255), the
    # selector is 0/1, and at most two exact terms (< 2**16) sum per lane.
    e2 = e_ref[...].astype(jnp.float32)                             # (TN, C)
    e_exp = jnp.dot(e2, sel_ref[...],
                    preferred_element_type=jnp.float32)             # (TN, L)

    row = (pl.program_id(1) * tile_n
           + lax.broadcasted_iota(jnp.int32, (tile_n, 1), 0)
           ).astype(jnp.float32)                                    # (TN, 1)

    # angles[n, k*ne + c] = (E[n, k] - (row0 + n)) * freq[c mod (ne//2)]
    angles = (e_exp - row) * freq_ref[...]                          # (TN, L)

    # cos(x) = sin(x + pi/2): one transcendental per element, no concat/select.
    out_ref[...] = jnp.sin(angles + phase_ref[...]).astype(out_ref.dtype)


def positional_encodings(E_idx, num_embeddings, period_range=(2, 1000), *,
                         tile_rows=None, out_dtype=jnp.float32):
    """JAX/Pallas equivalent of PositionalEncodings.forward.

    E_idx: (B, N, K) integer array of neighbor indices (values in [0, N)).
    Returns (B, N, K, num_embeddings) in `out_dtype` (default float32 matching
    PyTorch; pass bfloat16 to halve HBM writeback if the consumer allows it).
    """
    del period_range  # unused by the reference forward pass as well
    assert num_embeddings % 2 == 0, "num_embeddings must be even"
    B, N, K = E_idx.shape
    assert N <= 65535, "hi/lo byte expansion assumes neighbor indices < 2**16"
    F = num_embeddings // 2
    L = K * num_embeddings

    # --- resident constants (layout work hoisted out of the kernel) ----------
    freq = jnp.exp(
        jnp.arange(0, num_embeddings, 2, dtype=jnp.float32)
        * -(np.log(10000.0) / num_embeddings))                           # (F,)
    freq_tiled = jnp.tile(jnp.concatenate([freq, freq]), K).reshape(1, L)
    # sel[k, k*num_embeddings + c] = 1   ("repeat k across its ne lanes")
    sel = jnp.kron(jnp.eye(K, dtype=jnp.float32),
                   jnp.ones((1, num_embeddings), jnp.float32))           # (K, L)
    # pi/2 on the cos half of each group, 0 on the sin half.
    phase = jnp.tile(
        jnp.concatenate([jnp.full((F,), np.pi / 2.0, jnp.float32),
                         jnp.zeros((F,), jnp.float32)]), K).reshape(1, L)

    if N > 255:
        # hi/lo byte columns -> exact MXU expansion, recombined inside the
        # contraction against the stacked selector (no in-kernel scale/add).
        E32 = E_idx.astype(jnp.int32)
        e_in = jnp.concatenate([E32 & 0xFF00, E32 & 0x00FF], axis=-1)  # (B,N,2K)
        sel_in = jnp.concatenate([sel, sel], axis=0)                   # (2K, L)
    else:
        # All indices exact in 8 bits: single dot, no byte split.
        e_in = E_idx.astype(jnp.int32)                                 # (B,N,K)
        sel_in = sel                                                   # (K, L)
    C = e_in.shape[-1]

    # --- node-axis tiling: ~4 MiB output block, sublane-aligned --------------
    itemsize = jnp.dtype(out_dtype).itemsize
    align = 8 if itemsize >= 4 else 32 // itemsize       # 16 for bf16
    if tile_rows is not None:
        tile_n = min(N, int(tile_rows))
    else:
        target_bytes = 4 * 1024 * 1024
        tile_n = min(N, max(align, target_bytes // (L * itemsize)))
        # v7x: keep >= 2 "parallel" grid steps so both TensorCores get work.
        if B * pl.cdiv(N, tile_n) < 2 and N > align:
            half = -(-N // 2)
            tile_n = min(tile_n, -(-half // align) * align)
    if tile_n < N and tile_n % align != 0:
        tile_n = max(align, (tile_n // align) * align)
    if tile_n >= N:
        tile_n = N

    grid = (B, pl.cdiv(N, tile_n))

    out_flat = pl.pallas_call(
        functools.partial(_pos_enc_kernel, tile_n=tile_n),
        out_shape=jax.ShapeDtypeStruct((B, N, L), out_dtype),
        grid_spec=pltpu.PrefetchScalarGridSpec(
            num_scalar_prefetch=0,
            grid=grid,
            in_specs=[
                pl.BlockSpec((pl.Squeezed(), tile_n, C), lambda b, n: (b, n, 0)),
                pl.BlockSpec(sel_in.shape, lambda b, n: (0, 0)),
                pl.BlockSpec((1, L), lambda b, n: (0, 0)),
                pl.BlockSpec((1, L), lambda b, n: (0, 0)),
            ],
            out_specs=pl.BlockSpec((pl.Squeezed(), tile_n, L),
                                   lambda b, n: (b, n, 0)),
        ),
        compiler_params=pltpu.CompilerParams(
            dimension_semantics=("parallel", "parallel"),
            vmem_limit_bytes=32 * 1024 * 1024),
    )(e_in, sel_in, freq_tiled, phase)

    # Free, contiguous reshape back to the PyTorch output layout.
    return out_flat.reshape(B, N, K, num_embeddings)


def _reference(E_idx, num_embeddings):
    """Pure-JAX reference mirroring the PyTorch code."""
    N = E_idx.shape[1]
    ii = jnp.arange(N, dtype=jnp.float32).reshape(1, -1, 1)
    d = (E_idx.astype(jnp.float32) - ii)[..., None]
    frequency = jnp.exp(
        jnp.arange(0, num_embeddings, 2, dtype=jnp.float32)
        * -(np.log(10000.0) / num_embeddings))
    angles = d * frequency.reshape(1, 1, 1, -1)
    return jnp.concatenate((jnp.cos(angles), jnp.sin(angles)), axis=-1)


if __name__ == "__main__":
    key = jax.random.PRNGKey(0)
    num_embeddings = 16

    # Test 1: small shape matching the module's typical use (single dot path).
    B, N, K = 2, 8, 8
    E_idx = jax.random.randint(key, (B, N, K), 0, N, dtype=jnp.int32)
    out = jax.block_until_ready(positional_encodings(E_idx, num_embeddings))
    ref = _reference(E_idx, num_embeddings)
    np.testing.assert_allclose(np.asarray(out), np.asarray(ref), rtol=1e-5, atol=1e-5)

    # Test 2: node-axis tiling (multiple grid steps, partial last tile, iota
    # offset) with a forced small tile size; L = 192 (non-multiple of 128).
    key2 = jax.random.PRNGKey(1)
    B2, N2, K2 = 1, 40, 12
    E_idx2 = jax.random.randint(key2, (B2, N2, K2), 0, N2, dtype=jnp.int32)
    out2 = jax.block_until_ready(
        positional_encodings(E_idx2, num_embeddings, tile_rows=16))
    ref2 = _reference(E_idx2, num_embeddings)
    np.testing.assert_allclose(np.asarray(out2), np.asarray(ref2), rtol=1e-5, atol=1e-5)

    # Test 3: N > 255 exercises the hi/lo byte-column path and the automatic
    # >=2-grid-step split.  Slightly looser atol: the sin(x + pi/2) identity
    # rounds the argument at magnitude ~N (|err| <= ~N * 2^-24 ~= 1.8e-5 here),
    # which is inherent conditioning, not an expansion bug (those would be O(1)).
    key3 = jax.random.PRNGKey(2)
    B3, N3, K3 = 1, 300, 8
    E_idx3 = jax.random.randint(key3, (B3, N3, K3), 0, N3, dtype=jnp.int32)
    out3 = jax.block_until_ready(positional_encodings(E_idx3, num_embeddings))
    ref3 = _reference(E_idx3, num_embeddings)
    np.testing.assert_allclose(np.asarray(out3), np.asarray(ref3), rtol=1e-5, atol=1e-4)

    print("KERNEL_OK")
</pallas_src>

<mosaic_0001>
module attributes {stable_mosaic.version = 11 : i64} {
  func.func @_pos_enc_kernel(%arg0: i32, %arg1: i32, %arg2: memref<1x8x8xi32, #tpu.memory_space<vmem>>, %arg3: memref<8x128xf32, #tpu.memory_space<vmem>>, %arg4: memref<1x128xf32, #tpu.memory_space<vmem>>, %arg5: memref<1x128xf32, #tpu.memory_space<vmem>>, %arg6: memref<1x8x128xf32, #tpu.memory_space<vmem>>) attributes {dimension_semantics = [#tpu.dimension_semantics<parallel>, #tpu.dimension_semantics<parallel>], iteration_bounds = array<i64: 2, 1>, scalar_prefetch = 0 : i64, scratch_operands = 0 : i64, tpu.core_type = #tpu.core_type<tc>, window_params = [{transform_indices = @transform_0, window_bounds = array<i64: 1, 8, 8>}, {pipeline_mode = #tpu.pipeline_mode<synchronous>, transform_indices = @transform_1, window_bounds = array<i64: 8, 128>}, {pipeline_mode = #tpu.pipeline_mode<synchronous>, transform_indices = @transform_2, window_bounds = array<i64: 1, 128>}, {pipeline_mode = #tpu.pipeline_mode<synchronous>, transform_indices = @transform_3, window_bounds = array<i64: 1, 128>}, {transform_indices = @transform_4, window_bounds = array<i64: 1, 8, 128>}]} {
    %c0 = arith.constant 0 : index
    %c0_0 = arith.constant 0 : index
    %c0_1 = arith.constant 0 : index
    %0 = vector.load %arg2[%c0, %c0_0, %c0_1] : memref<1x8x8xi32, #tpu.memory_space<vmem>>, vector<1x8x8xi32>
    %1 = vector.shape_cast %0 : vector<1x8x8xi32> to vector<8x8xi32>
    %2 = arith.sitofp %1 : vector<8x8xi32> to vector<8x8xf32>
    %c0_2 = arith.constant 0 : index
    %c0_3 = arith.constant 0 : index
    %3 = vector.load %arg3[%c0_2, %c0_3] : memref<8x128xf32, #tpu.memory_space<vmem>>, vector<8x128xf32>
    %cst = arith.constant dense<0.000000e+00> : vector<8x128xf32>
    %4 = tpu.matmul %2, %3, %cst {dimension_numbers = #tpu.dot_dimension_numbers<[1], [0], [0], [1], [0, 0, 1, 1], [], []>} : vector<8x8xf32>, vector<8x128xf32>, vector<8x128xf32> -> vector<8x128xf32>
    %c8_i32 = arith.constant 8 : i32
    %5 = arith.muli %arg1, %c8_i32 : i32
    %6 = tpu.iota {dimensions = array<i32: 0>} : vector<8x1xi32>
    %7 = vector.broadcast %5 : i32 to vector<8x1xi32>
    %8 = arith.addi %7, %6 : vector<8x1xi32>
    %9 = arith.sitofp %8 : vector<8x1xi32> to vector<8x1xf32>
    %10 = vector.broadcast %9 : vector<8x1xf32> to vector<8x128xf32>
    %11 = arith.subf %4, %10 : vector<8x128xf32>
    %c0_4 = arith.constant 0 : index
    %c0_5 = arith.constant 0 : index
    %12 = vector.load %arg4[%c0_4, %c0_5] : memref<1x128xf32, #tpu.memory_space<vmem>>, vector<1x128xf32>
    %13 = vector.broadcast %12 : vector<1x128xf32> to vector<8x128xf32>
    %14 = arith.mulf %11, %13 : vector<8x128xf32>
    %c0_6 = arith.constant 0 : index
    %c0_7 = arith.constant 0 : index
    %15 = vector.load %arg5[%c0_6, %c0_7] : memref<1x128xf32, #tpu.memory_space<vmem>>, vector<1x128xf32>
    %16 = vector.broadcast %15 : vector<1x128xf32> to vector<8x128xf32>
    %17 = arith.addf %14, %16 : vector<8x128xf32>
    %18 = math.sin %17 : vector<8x128xf32>
    %c0_8 = arith.constant 0 : index
    %c0_9 = arith.constant 0 : index
    %c0_10 = arith.constant 0 : index
    %19 = vector.load %arg6[%c0_8, %c0_9, %c0_10] : memref<1x8x128xf32, #tpu.memory_space<vmem>>, vector<1x8x128xf32>
    %20 = vector.shape_cast %19 : vector<1x8x128xf32> to vector<8x128xf32>
    %21 = vector.shape_cast %18 : vector<8x128xf32> to vector<1x8x128xf32>
    tpu.vector_store %arg6[%c0_8, %c0_9, %c0_10], %21 {strides = array<i32>} : memref<1x8x128xf32, #tpu.memory_space<vmem>>, vector<1x8x128xf32>,
    return
  }
  func.func @transform_0(%arg0: i32, %arg1: i32) -> (i32, i32, i32) {
    %c0_i32 = arith.constant 0 : i32
    %c0_i32_0 = arith.constant 0 : i32
    return %arg0, %arg1, %c0_i32 : i32, i32, i32
  }
  func.func @transform_1(%arg0: i32, %arg1: i32) -> (i32, i32) {
    %c0_i32 = arith.constant 0 : i32
    %c0_i32_0 = arith.constant 0 : i32
    %c0_i32_1 = arith.constant 0 : i32
    return %c0_i32, %c0_i32_0 : i32, i32
  }
  func.func @transform_2(%arg0: i32, %arg1: i32) -> (i32, i32) {
    %c0_i32 = arith.constant 0 : i32
    %c0_i32_0 = arith.constant 0 : i32
    %c0_i32_1 = arith.constant 0 : i32
    return %c0_i32, %c0_i32_0 : i32, i32
  }
  func.func @transform_3(%arg0: i32, %arg1: i32) -> (i32, i32) {
    %c0_i32 = arith.constant 0 : i32
    %c0_i32_0 = arith.constant 0 : i32
    %c0_i32_1 = arith.constant 0 : i32
    return %c0_i32, %c0_i32_0 : i32, i32
  }
  func.func @transform_4(%arg0: i32, %arg1: i32) -> (i32, i32, i32) {
    %c0_i32 = arith.constant 0 : i32
    %c0_i32_0 = arith.constant 0 : i32
    return %arg0, %arg1, %c0_i32 : i32, i32, i32
  }
}

</mosaic_0001>

<llo_original>
// kernel: tpu_custom_call.1
$region0: #{tpu_custom_call.1}
  #allocation0 [shape = 'u32[]', space=smem, size = 0x4, offset = 0x4, fixed_abs, tag = 'smem constant byte address 0x4 - core index']
  #allocation1 [shape = 'u32[144,128]{1,0:T(1,128)}', space=vmem, size = 0x12000, scoped, tag = 'internal scratch']
  %s0 = inlined_call_operand.hbm [shape: s32[2,8,8], index: 0, kind: input, shape index: {}]
  %s1 = inlined_call_operand.hbm [shape: f32[8,128], index: 1, kind: input, shape index: {}]
  %s2 = inlined_call_operand.vmem [shape: f32[1,128], index: 2, kind: input, shape index: {}]
  %s3 = inlined_call_operand.vmem [shape: f32[1,128], index: 3, kind: input, shape index: {}]
  %s4 = inlined_call_operand.hbm [shape: f32[2,8,128], index: 4, kind: output, shape index: {}]
  %s5 = sld [smem:[#allocation0]]
  $region57: #{tpu_custom_call.1} parent=0
    _
  %s7 = ssub.s32 1, %s5
  %s8 = scalar_select 0, %s7, %s5
  $region1: #{tpu_custom_call.1} parent=0
    #allocation2 [shape = 'u8[8192]{0}', space=vmem, size = 0x2000, scoped, tag = 'input window, operand 0']
    #allocation3 [shape = 's32[2]{0}', space=sflag, size = 0x8, scoped, tag = 'scoped memory for tpu_custom_call.1']
    #allocation4 [shape = 's32[2]{0}', space=sflag, size = 0x8, scoped, tag = 'scoped memory for tpu_custom_call.1']
    #allocation5 [shape = 'u8[4096]{0}', space=vmem, size = 0x1000, scoped, tag = 'input window, operand 1, single buffered']
    #allocation6 [shape = 's32[1]{0}', space=sflag, size = 0x4, scoped, tag = 'scoped memory for tpu_custom_call.1']
    #allocation7 [shape = 'u8[8192]{0}', space=vmem, size = 0x2000, scoped, tag = 'output window, operand 0']
    %9 = vsyncpa [#allocation3], 0
    %s10 = scalar_lea.sflag [#allocation3], 1
    %11 = vsyncpa %s10, 0
    %12 = vsyncpa [#allocation6], 0
    %13 = vsyncpa [#allocation4], 0
    %s14 = scalar_lea.sflag [#allocation4], 1
    %15 = vsyncpa %s14, 0
    loop: start=0, step=1, limit=4
    $region2: #{tpu_custom_call.1} parent=1 // loop_pre_header
      _
    $region3: #{tpu_custom_call.1} parent=1 // loop_header
      %s17 = sphi 0, %s21
      %p18 = scmp.ge.s32.totalorder %s17, 4
      %s24 = sphi 0, %s36
      %s25 = sphi 0, %s32
      %s26 = sphi 0, %s24
      %s27 = sphi 0, %s25
      %s28 = sphi 0, %s26
      %s29 = sphi 0, %s27
      %s41 = sphi 0, %s43
      %s44 = sphi 0, %s41
      %s45 = sphi 0, %s44
      %s61 = sphi 0, %s45
      %s65 = sphi 0, %s65
      %s67 = sphi 0, %s65
      %s68 = sphi 0, %s67
      %s82 = sphi 0, %s68
      %s86 = sphi 0, %s86
      %s88 = sphi 0, %s86
      %s89 = sphi 0, %s88
      %s103 = sphi 0, %s89
      %s107 = sphi 0, %s107
      %s109 = sphi 0, %s107
      %s110 = sphi 0, %s109
      %s124 = sphi 0, %s110
      %s132 = sphi 0, %s134
      %s135 = sphi 0, %s132
      %s136 = sphi 0, %s135
      %s152 = sphi 0, %s136
    $region4: #{tpu_custom_call.1} parent=1 // loop_header_branch
      %20 = sbr.rel (%p18) target = $region8
    $region5: #{tpu_custom_call.1} parent=1 // loop_body
      %s22 = ssub.s32 %s17, 1
      %s23 = ssub.s32 %s17, 2
      %s30 = sadd.s32 1, %s25
      %p31 = scmp.ge.s32.totalorder %s30, 1
      %s32 = scalar_select %p31, 0, %s30
      %s33 = sadd.s32 1, %s24
      %s34 = scalar_select %p31, %s33, %s24
      %p35 = scmp.ge.s32.totalorder %s34, 2
      %s36 = scalar_select %p35, 0, %s34
      %s37 = ssub.s32 %s24, %s36
      %s38 = ssub.s32 %s25, %s32
      %s39 = sor.u32 %s37, %s38
      %p40 = scmp.eq.s32.totalorder %s39, 0
      %s42 = sadd.s32 %s41, 1
      %s43 = scalar_select %p40, %s41, %s42
      %p46 = pneg %p40
      %p47 = scmp.eq.s32.totalorder %s17, 1
      %p48 = por %p46, %p47
      %p49 = scmp.ne.s32.totalorder %s41, %s44
      %p50 = scmp.eq.s32.totalorder %s17, 0
      %p51 = por %p49, %p50
      %p52 = scmp.ne.s32.totalorder %s41, %s44
      %p53 = scmp.eq.s32.totalorder %s22, 1
      %p54 = por %p52, %p53
      %p55 = scmp.ne.s32.totalorder %s44, %s45
      %p56 = scmp.eq.s32.totalorder %s22, 0
      %p57 = por %p55, %p56
      %p58 = scmp.ne.s32.totalorder %s44, %s45
      %p59 = scmp.eq.s32.totalorder %s23, 1
      %p60 = por %p58, %p59
      %p62 = scmp.ne.s32.totalorder %s45, %s61
      %p63 = scmp.eq.s32.totalorder %s23, 0
      %p64 = por %p62, %p63
      %s66 = sadd.s32 %s65, 1
      %p69 = scmp.eq.s32.totalorder %s17, 1
      %p70 = scmp.ne.s32.totalorder %s65, %s67
      %p71 = scmp.eq.s32.totalorder %s17, 0
      %p72 = por %p70, %p71
      %p73 = scmp.ne.s32.totalorder %s65, %s67
      %p74 = scmp.eq.s32.totalorder %s22, 1
      %p75 = por %p73, %p74
      %p76 = scmp.ne.s32.totalorder %s67, %s68
      %p77 = scmp.eq.s32.totalorder %s22, 0
      %p78 = por %p76, %p77
      %p79 = scmp.ne.s32.totalorder %s67, %s68
      %p80 = scmp.eq.s32.totalorder %s23, 1
      %p81 = por %p79, %p80
      %p83 = scmp.ne.s32.totalorder %s68, %s82
      %p84 = scmp.eq.s32.totalorder %s23, 0
      %p85 = por %p83, %p84
      %s87 = sadd.s32 %s86, 1
      %p90 = scmp.eq.s32.totalorder %s17, 1
      %p91 = scmp.ne.s32.totalorder %s86, %s88
      %p92 = scmp.eq.s32.totalorder %s17, 0
      %p93 = por %p91, %p92
      %p94 = scmp.ne.s32.totalorder %s86, %s88
      %p95 = scmp.eq.s32.totalorder %s22, 1
      %p96 = por %p94, %p95
      %p97 = scmp.ne.s32.totalorder %s88, %s89
      %p98 = scmp.eq.s32.totalorder %s22, 0
      %p99 = por %p97, %p98
      %p100 = scmp.ne.s32.totalorder %s88, %s89
      %p101 = scmp.eq.s32.totalorder %s23, 1
      %p102 = por %p100, %p101
      %p104 = scmp.ne.s32.totalorder %s89, %s103
      %p105 = scmp.eq.s32.totalorder %s23, 0
      %p106 = por %p104, %p105
      %s108 = sadd.s32 %s107, 1
      %p111 = scmp.eq.s32.totalorder %s17, 1
      %p112 = scmp.ne.s32.totalorder %s107, %s109
      %p113 = scmp.eq.s32.totalorder %s17, 0
      %p114 = por %p112, %p113
      %p115 = scmp.ne.s32.totalorder %s107, %s109
      %p116 = scmp.eq.s32.totalorder %s22, 1
      %p117 = por %p115, %p116
      %p118 = scmp.ne.s32.totalorder %s109, %s110
      %p119 = scmp.eq.s32.totalorder %s22, 0
      %p120 = por %p118, %p119
      %p121 = scmp.ne.s32.totalorder %s109, %s110
      %p122 = scmp.eq.s32.totalorder %s23, 1
      %p123 = por %p121, %p122
      %p125 = scmp.ne.s32.totalorder %s110, %s124
      %p126 = scmp.eq.s32.totalorder %s23, 0
      %p127 = por %p125, %p126
      %s128 = ssub.s32 %s24, %s36
      %s129 = ssub.s32 %s25, %s32
      %s130 = sor.u32 %s128, %s129
      %p131 = scmp.eq.s32.totalorder %s130, 0
      %s133 = sadd.s32 %s132, 1
      %s134 = scalar_select %p131, %s132, %s133
      %p137 = pneg %p131
      %p138 = scmp.eq.s32.totalorder %s17, 1
      %p139 = por %p137, %p138
      %p140 = scmp.ne.s32.totalorder %s132, %s135
      %p141 = scmp.eq.s32.totalorder %s17, 0
      %p142 = por %p140, %p141
      %p143 = scmp.ne.s32.totalorder %s132, %s135
      %p144 = scmp.eq.s32.totalorder %s22, 1
      %p145 = por %p143, %p144
      %p146 = scmp.ne.s32.totalorder %s135, %s136
      %p147 = scmp.eq.s32.totalorder %s22, 0
      %p148 = por %p146, %p147
      %p149 = scmp.ne.s32.totalorder %s135, %s136
      %p150 = scmp.eq.s32.totalorder %s23, 1
      %p151 = por %p149, %p150
      %p153 = scmp.ne.s32.totalorder %s136, %s152
      %p154 = scmp.eq.s32.totalorder %s23, 0
      %p155 = por %p153, %p154
      %p156 = scmp.le.s32.totalorder 1, %s17
      %p157 = scmp.lt.s32.totalorder %s17, 3
      %p158 = pnand %p156, %p157
      %p159 = pneg %p158
      // Predicated region
      $region9: #{tpu_custom_call.1} parent=5 // pred_check
        _
      $region10: #{tpu_custom_call.1} parent=5 // pred_check_branch
        %161 = sbr.rel (%p158) target = $region12
      $region11: #{tpu_custom_call.1} parent=5 // pred_region
        %s162 = ssub.s32 %s17, 1
        // Predicated region
        $region13: #{tpu_custom_call.1} parent=11 // pred_check
          %p163 = pneg %p78
        $region14: #{tpu_custom_call.1} parent=11 // pred_check_branch
          %165 = sbr.rel (%p163) target = $region16
        $region15: #{tpu_custom_call.1} parent=11 // pred_region
          %s167 = ssub.s32 128, 128
          %168 = vsyncadd [#allocation6], %s167
          %s170 = sshll.u32 [#allocation5], 4
          %s171 = int_to_ptr.vmem [resolvable:$true] %s170
          %173 = dma.hbm_to_vmem [thread:$0]  %s1, 128, %s171, [#allocation6]
        $region16: #{tpu_custom_call.1} parent=11 // pred_fallthru
          _
        // Predicated region
        $region17: #{tpu_custom_call.1} parent=11 // pred_check
          %p174 = pneg %p99
        $region18: #{tpu_custom_call.1} parent=11 // pred_check_branch
          %176 = sbr.rel (%p174) target = $region20
        $region19: #{tpu_custom_call.1} parent=11 // pred_region
          _
        $region20: #{tpu_custom_call.1} parent=11 // pred_fallthru
          _
        // Predicated region
        $region21: #{tpu_custom_call.1} parent=11 // pred_check
          %p177 = pneg %p120
        $region22: #{tpu_custom_call.1} parent=11 // pred_check_branch
          %179 = sbr.rel (%p177) target = $region24
        $region23: #{tpu_custom_call.1} parent=11 // pred_region
          _
        $region24: #{tpu_custom_call.1} parent=11 // pred_fallthru
          _
      $region12: #{tpu_custom_call.1} parent=5 // pred_fallthru
        _
      %p180 = scmp.lt.s32.totalorder %s17, 2
      // Predicated region
      $region25: #{tpu_custom_call.1} parent=5 // pred_check
        %p181 = pneg %p180
      $region26: #{tpu_custom_call.1} parent=5 // pred_check_branch
        %183 = sbr.rel (%p181) target = $region28
      $region27: #{tpu_custom_call.1} parent=5 // pred_region
        // Predicated region
        $region29: #{tpu_custom_call.1} parent=27 // pred_check
          %p184 = pneg %p51
        $region30: #{tpu_custom_call.1} parent=27 // pred_check_branch
          %186 = sbr.rel (%p184) target = $region32
        $region31: #{tpu_custom_call.1} parent=27 // pred_region
          %s187 = sand.u32 %s41, 1
          %s188 = scalar_lea.sflag [#allocation3], %s187
          %s189 = sand.u32 %s41, 1
          %s190 = smul.addr %s189, 8
          %s191 = scalar_lea.vmem [#allocation2], %s190
          %s193 = ssub.s32 128, 128
          %194 = vsyncadd %s188, %s193
          %s195 = sadd.s32 %s25, %s24
          %s196 = smul.addr %s195, 128
          %s197 = scalar_lea.hbm %s0, %s196
          %s199 = sshll.u32 %s191, 4
          %s200 = int_to_ptr.vmem [resolvable:$true] %s199
          %202 = dma.hbm_to_vmem [thread:$0]  %s197, 128, %s200, %s188
        $region32: #{tpu_custom_call.1} parent=27 // pred_fallthru
          _
      $region28: #{tpu_custom_call.1} parent=5 // pred_fallthru
        _
      %p203 = scmp.le.s32.totalorder 1, %s17
      %p204 = scmp.lt.s32.totalorder %s17, 3
      %p205 = pnand %p203, %p204
      %p206 = pneg %p205
      // Predicated region
      $region33: #{tpu_custom_call.1} parent=5 // pred_check
        _
      $region34: #{tpu_custom_call.1} parent=5 // pred_check_branch
        %208 = sbr.rel (%p205) target = $region36
      $region35: #{tpu_custom_call.1} parent=5 // pred_region
        %s209 = ssub.s32 %s17, 1
        %s210 = sand.u32 %s44, 1
        %s211 = scalar_lea.sflag [#allocation3], %s210
        %s212 = sand.u32 %s44, 1
        %s213 = smul.addr %s212, 8
        %s214 = scalar_lea.vmem [#allocation2], %s213
        // Predicated region
        $region37: #{tpu_custom_call.1} parent=35 // pred_check
          %p215 = pneg %p57
        $region38: #{tpu_custom_call.1} parent=35 // pred_check_branch
          %217 = sbr.rel (%p215) target = $region40
        $region39: #{tpu_custom_call.1} parent=35 // pred_region
          %218 = dma.done %s211, 128
        $region40: #{tpu_custom_call.1} parent=35 // pred_fallthru
          _
        // Predicated region
        $region41: #{tpu_custom_call.1} parent=35 // pred_check
          %p219 = pneg %p78
        $region42: #{tpu_custom_call.1} parent=35 // pred_check_branch
          %221 = sbr.rel (%p219) target = $region44
        $region43: #{tpu_custom_call.1} parent=35 // pred_region
          %222 = dma.done [#allocation6], 128
        $region44: #{tpu_custom_call.1} parent=35 // pred_fallthru
          _
        %s223 = sand.u32 %s44, 1
        %s224 = scalar_lea.sflag [#allocation3], %s223
        %s225 = sand.u32 %s44, 1
        %s226 = smul.addr %s225, 8
        %s227 = scalar_lea.vmem [#allocation2], %s226
        %p228 = pneg %p57
        %p229 = pneg %p54
        %p230 = pneg %p78
        %p231 = pneg %p75
        %p232 = pneg %p99
        %p233 = pneg %p96
        %p234 = pneg %p120
        %p235 = pneg %p117
        %p236 = pneg %p148
        %p237 = pneg %p145
        %s238 = sand.u32 %s135, 1
        %s239 = scalar_lea.sflag [#allocation4], %s238
        %s240 = sand.u32 %s135, 1
        %s241 = smul.addr %s240, 8
        %s242 = scalar_lea.vmem [#allocation7], %s241
        %v243 = vld [vmem:[%s214] sm:$0xff]
        %v244 = vcvt.s32.f32 %v243
        %v245 = vld [vmem:[#allocation5] sm:$0xff]
        %vm246 = vcmask 64512
        %v248 = vsel %vm246, %v244, 0
        %250 = vmatprep.subr.mxu0 0.0
        %251 = vmatpush1.msra.mxu0 0.0
        %252 = vmatprep.subr.mxu0 0.0
        %253 = vmatpush1.msra.mxu0 0.0
        %254 = vmatprep.subr.mxu0 0.0
        %255 = vmatpush1.msra.mxu0 0.0
        %256 = vmatprep.subr.mxu0 0.0
        %257 = vmatpush1.msra.mxu0 0.0
        %258 = vmatprep.subr.mxu0 0.0
        %259 = vmatpush1.msra.mxu0 0.0
        %260 = vmatprep.subr.mxu0 0.0
        %261 = vmatpush1.msra.mxu0 0.0
        %262 = vmatprep.subr.mxu0 0.0
        %263 = vmatpush1.msra.mxu0 0.0
        %264 = vmatprep.subr.mxu0 0.0
        %265 = vmatpush1.msra.mxu0 0.0
        %266 = vmatprep.subr.mxu0 0.0
        %267 = vmatpush1.msra.mxu0 0.0
        %268 = vmatprep.subr.mxu0 0.0
        %269 = vmatpush1.msra.mxu0 0.0
        %270 = vmatprep.subr.mxu0 0.0
        %271 = vmatpush1.msra.mxu0 0.0
        %272 = vmatprep.subr.mxu0 0.0
        %273 = vmatpush1.msra.mxu0 0.0
        %274 = vmatprep.subr.mxu0 0.0
        %275 = vmatpush1.msra.mxu0 0.0
        %276 = vmatprep.subr.mxu0 0.0
        %277 = vmatpush1.msra.mxu0 0.0
        %278 = vmatprep.subr.mxu0 0.0
        %279 = vmatpush1.msra.mxu0 0.0
        %280 = vmatprep.subr.mxu0 0.0
        %281 = vmatpush1.msra.mxu0 %v245
        %282 = vmatprep.subr.mxu0 0.0
        %283 = vmatpush2.msra.mxu0 0.0
        %284 = vmatprep.subr.mxu0 0.0
        %285 = vmatpush2.msra.mxu0 0.0
        %286 = vmatprep.subr.mxu0 0.0
        %287 = vmatpush2.msra.mxu0 0.0
        %288 = vmatprep.subr.mxu0 0.0
        %289 = vmatpush2.msra.mxu0 0.0
        %290 = vmatprep.subr.mxu0 0.0
        %291 = vmatpush2.msra.mxu0 0.0
        %292 = vmatprep.subr.mxu0 0.0
        %293 = vmatpush2.msra.mxu0 0.0
        %294 = vmatprep.subr.mxu0 0.0
        %295 = vmatpush2.msra.mxu0 0.0
        %296 = vmatprep.subr.mxu0 0.0
        %297 = vmatpush2.msra.mxu0 0.0
        %298 = vmatprep.subr.mxu0 0.0
        %299 = vmatpush2.msra.mxu0 0.0
        %300 = vmatprep.subr.mxu0 0.0
        %301 = vmatpush2.msra.mxu0 0.0
        %302 = vmatprep.subr.mxu0 0.0
        %303 = vmatpush2.msra.mxu0 0.0
        %304 = vmatprep.subr.mxu0 0.0
        %305 = vmatpush2.msra.mxu0 0.0
        %306 = vmatprep.subr.mxu0 0.0
        %307 = vmatpush2.msra.mxu0 0.0
        %308 = vmatprep.subr.mxu0 0.0
        %309 = vmatpush2.msra.mxu0 0.0
        %310 = vmatprep.subr.mxu0 0.0
        %311 = vmatpush2.msra.mxu0 0.0
        %312 = vmatprep.subr.mxu0 0.0
        %313 = vmatpush2.msra.mxu0 0.0
        %314 = vmatprep.mubr.f32.mxu0 0.0
        %315 = vmatmul.mubr.f32.gmra.mxu0 %v248
        %v316 = vpop.f32.mrf.mxu0
        %v317 = vadd.f32 0.0, %v316
        %v318 = vpop.f32.mrf.mxu0
        %319 = vdwg.mxu0
        %s320 = smul.u32 %s27, 8
        %v321 = vlaneseq
        %v322 = vshrl.u32 %v321, 7
        %v323 = vstv %s320
        %v324 = vadd.s32 %v323, %v322
        %v325 = vcvt.s32.f32 %v324
        %v326 = vsub.f32 %v317, %v325
        %v327 = vld [vmem:[%s2] sm:$0x1]
        %v329 = vlaneseq
        %v330 = vshrl.u32 %v329, 7
        %v331 = vsub.s32 0, %v330
        %v332 = vrot.slane %v327, %v331
        %v334 = vmul.f32 %v326, %v332
        %v335 = vld [vmem:[%s3] sm:$0x1]
        %v337 = vlaneseq
        %v338 = vshrl.u32 %v337, 7
        %v339 = vsub.s32 0, %v338
        %v340 = vrot.slane %v335, %v339
        %v342 = vadd.f32 %v334, %v340
        %v343 = vand.u32 2147483647, %v342
        %vm344 = vcmp.le.f32.partialorder %v343, 0.7853982
        %vm345 = vcmp.lt.s32.totalorder %v342, 0
        %v346 = vand.u32 %v342, 2139095040
        %v347 = vshrl.u32 %v346, 23
        %v348 = vsub.s32 %v347, 127
        %v349 = vand.u32 2147483647, %v342
        %v350 = vand.u32 %v349, 8388607
        %v351 = vor.u32 %v350, 8388608
        %v352 = vsub.s32 0, %v351
        %v353 = vadd.s32 %v348, 1
        %vm354 = vcmp.gt.s32.totalorder %v353, 0
        %v355 = vsel %vm354, %v353, 0
        %v356 = vshrl.u32 %v355, 5
        %v357 = vand.u32 %v355, 31
        %v358 = vsub.s32 32, %v357
        %v359 = vshrl.u32 683565275, %v358
        %v360 = vshll.u32 683565275, %v357
        %v361 = vshrl.u32 2475754826, %v358
        %v362 = vor.u32 %v360, %v361
        %v363 = vshll.u32 2475754826, %v357
        %v364 = vshrl.u32 2131351028, %v358
        %v365 = vor.u32 %v363, %v364
        %v366 = vshll.u32 2131351028, %v357
        %v367 = vshrl.u32 2102212464, %v358
        %v368 = vor.u32 %v366, %v367
        %v369 = vshll.u32 2102212464, %v357
        %v370 = vshrl.u32 920167782, %v358
        %v371 = vor.u32 %v369, %v370
        %v372 = vshll.u32 920167782, %v357
        %v373 = vshrl.u32 1326507024, %v358
        %v374 = vor.u32 %v372, %v373
        %vm375 = vcmp.lt.s32.totalorder %v356, 1
        %vm376 = vcmp.lt.s32.totalorder %v356, 2
        %vm377 = vcmp.lt.s32.totalorder %v356, 3
        %vm378 = vcmp.lt.s32.totalorder %v356, 4
        %v379 = vsel %vm375, %v359, %v362
        %v380 = vsel %vm378, %v368, 2102212464
        %v381 = vsel %vm377, %v365, %v380
        %v382 = vsel %vm376, %v379, %v381
        %v383 = vsel %vm375, %v362, %v365
        %v384 = vsel %vm378, %v371, 920167782
        %v385 = vsel %vm377, %v368, %v384
        %v386 = vsel %vm376, %v383, %v385
        %v387 = vsel %vm375, %v365, %v368
        %v388 = vsel %vm378, %v374, 1326507024
        %v389 = vsel %vm377, %v371, %v388
        %v390 = vsel %vm376, %v387, %v389
        %v391 = vshll.u32 %v351, 8
        %v392 = vmul.u32.u64.compose %v391, %v390
        %v393 = vextract.low.u32 %v392
        %v394 = vextract.high.u32 %v392
        %v395 = vmul.u32.u64.compose %v391, %v386
        %v396 = vextract.low.u32 %v395
        %v397 = vextract.high.u32 %v395
        %v398 = vmul.u32 %v391, %v382
        %v399 = vadd.s32 %v394, %v396
        %vm400 = vc.u32 %v394, %v396
        %v401 = vadd.s32 %v397, 1
        %v402 = vsel %vm400, %v401, %v397
        %v403 = vadd.s32 %v398, %v402
        %v404 = vadd.s32 %v403, 536870912
        %v405 = vshrl.u32 %v404, 30
        %v406 = vshll.u32 %v405, 30
        %v407 = vsub.s32 %v403, %v406
        %vm408 = vcmp.lt.s32.totalorder %v407, 0
        %v409 = vsub.s32 0, %v407
        %v410 = vsel %vm408, %v409, %v407
        %v411 = vclz %v410
        %v412 = vsub.s32 %v411, 2
        %vm413 = vcmp.gt.s32.totalorder 0, %v412
        %v414 = vsel %vm413, 0, %v412
        %v415 = vsub.s32 32, %v414
        %v416 = vshll.u32 %v407, %v414
        %v417 = vshrl.u32 %v399, %v415
        %v418 = vor.u32 %v416, %v417
        %v419 = vsub.s32 4294967266, %v414
        %v420 = vadd.s32 %v419, 127
        %v421 = vshll.u32 %v420, 23
        %v422 = vor.u32 4788187, %v421
        %v423 = vand.u32 2147483647, %v422
        %v425 = vcvt.s32.f32 %v418
        %v426 = vmul.f32 %v425, %v423
        %v427 = vxor.u32 %v426, 2147483648
        %v428 = vsel %vm345, %v427, %v426
        %v429 = vsub.s32 4, %v405
        %v430 = vsel %vm345, %v429, %v405
        %v431 = vsel %vm344, %v342, %v428
        %v432 = vsel %vm344, 0, %v430
        %v433 = vcosq.f32.pop %v431
        %v434 = vsinq.f32.pop %v431
        %vm435 = vweird.f32 %v342
        %v436 = vadd.s32 %v432, 3
        %v437 = vand.u32 %v436, 3
        %vm438 = vcmp.lt.s32.totalorder %v437, 2
        %vm439 = vcmp.eq.s32.totalorder %v437, 0
        %v440 = vxor.u32 %v434, 2147483648
        %v441 = vsel %vm439, %v433, %v440
        %vm442 = vcmp.eq.s32.totalorder %v437, 2
        %v443 = vxor.u32 %v433, 2147483648
        %v444 = vsel %vm442, %v443, %v434
        %v445 = vsel %vm438, %v441, %v444
        %v446 = vsel %vm435, nan, %v445
        %447 = vst [vmem:[%s242] sm:$0xff] %v446
        %s448 = sand.u32 %s135, 1
        %s449 = scalar_lea.sflag [#allocation4], %s448
        %s450 = sand.u32 %s135, 1
        %s451 = smul.addr %s450, 8
        %s452 = scalar_lea.vmem [#allocation7], %s451
        // Predicated region
        $region45: #{tpu_custom_call.1} parent=35 // pred_check
          %p453 = pneg %p145
        $region46: #{tpu_custom_call.1} parent=35 // pred_check_branch
          %455 = sbr.rel (%p453) target = $region48
        $region47: #{tpu_custom_call.1} parent=35 // pred_region
          %s457 = ssub.s32 128, 128
          %458 = vsyncadd %s449, %s457
          %s459 = sadd.s32 %s27, %s26
          %s460 = smul.addr %s459, 128
          %s461 = scalar_lea.hbm %s4, %s460
          %s463 = sshll.u32 %s452, 4
          %s464 = int_to_ptr.vmem [resolvable:$true] %s463
          %466 = dma.vmem_to_hbm [thread:$0]  %s464, 128, %s461, %s449
        $region48: #{tpu_custom_call.1} parent=35 // pred_fallthru
          _
      $region36: #{tpu_custom_call.1} parent=5 // pred_fallthru
        _
      %p467 = scmp.le.s32.totalorder 2, %s17
      // Predicated region
      $region49: #{tpu_custom_call.1} parent=5 // pred_check
        %p468 = pneg %p467
      $region50: #{tpu_custom_call.1} parent=5 // pred_check_branch
        %470 = sbr.rel (%p468) target = $region52
      $region51: #{tpu_custom_call.1} parent=5 // pred_region
        %s471 = ssub.s32 %s17, 2
        // Predicated region
        $region53: #{tpu_custom_call.1} parent=51 // pred_check
          %p472 = pneg %p151
        $region54: #{tpu_custom_call.1} parent=51 // pred_check_branch
          %474 = sbr.rel (%p472) target = $region56
        $region55: #{tpu_custom_call.1} parent=51 // pred_region
          %s475 = sand.u32 %s136, 1
          %s476 = scalar_lea.sflag [#allocation4], %s475
          %s477 = sand.u32 %s136, 1
          %s478 = smul.addr %s477, 8
          %s479 = scalar_lea.vmem [#allocation7], %s478
          %480 = dma.done %s476, 128
        $region56: #{tpu_custom_call.1} parent=51 // pred_fallthru
          _
      $region52: #{tpu_custom_call.1} parent=5 // pred_fallthru
        _
    $region6: #{tpu_custom_call.1} parent=1 // loop_footer
      %s21 = sadd.s32 1, %s17
    $region7: #{tpu_custom_call.1} parent=1 // loop_footer_branch
      %16 = sbr.rel target = $region3
    $region8: #{tpu_custom_call.1} parent=1 // loop_exit
      _
    %481 = vsyncpa [#allocation3], 1
    %s482 = scalar_lea.sflag [#allocation3], 1
    %483 = vsyncpa %s482, 1
    %484 = vsyncpa [#allocation6], 1
    %485 = vsyncpa [#allocation4], 1
    %s486 = scalar_lea.sflag [#allocation4], 1
    %487 = vsyncpa %s486, 1

</llo_original>
